<compile_context>
chip_gen: v7x
topology: tpu7x:2x2x1
jax: 0.10.0
libtpu: 0.0.40
codegen_flags: <defaults>
</compile_context>

<pallas_src>
import functools
import math

import jax
import jax.numpy as jnp
from jax.experimental import pallas as pl
from jax.experimental.pallas import tpu as pltpu


def _round_up(x, m):
    return ((x + m - 1) // m) * m


def _choose_block(n_tokens, tok_block):
    """Pick a token block (multiple of 8) and the padded token count."""
    tb = min(int(tok_block), _round_up(n_tokens, 8))
    tb = _round_up(tb, 8)
    n_pad = _round_up(n_tokens, tb)
    return tb, n_pad


def _feature_embed_kernel(*refs, num_features, embed_dim, use_dropout,
                          drop_threshold, keep_scale):
    # refs = (ids, table_0..table_{F-1}, w, b, [bits], out)
    ids_ref = refs[0]
    tbl_refs = refs[1:1 + num_features]
    w_ref = refs[1 + num_features]
    b_ref = refs[2 + num_features]
    bits_ref = refs[3 + num_features] if use_dropout else None
    out_ref = refs[-1]

    ids = ids_ref[...]                                   # (T, F) int32
    tb = ids.shape[0]
    acc = jnp.zeros((tb, embed_dim), dtype=jnp.float32)

    for f in range(num_features):
        tbl = tbl_refs[f][...]                           # (Vp, D)
        vp = tbl.shape[0]
        # Gather as one-hot @ table on the MXU (small vocab per feature).
        iota = jax.lax.broadcasted_iota(jnp.int32, (tb, vp), 1)
        onehot = (ids[:, f:f + 1] == iota).astype(tbl.dtype)
        emb = jnp.dot(onehot, tbl,
                      preferred_element_type=jnp.float32)        # (T, D)

        if use_dropout:
            # Integer-threshold Bernoulli mask: keep iff bits >= threshold.
            keep = bits_ref[f] >= jnp.int32(drop_threshold)
            emb = jnp.where(keep, emb * jnp.float32(keep_scale),
                            jnp.float32(0.0))

        # Fused "concat + Linear": accumulate per-feature slice of W.
        w_f = w_ref[f * embed_dim:(f + 1) * embed_dim, :]         # (D, D)
        acc = acc + jnp.dot(emb.astype(w_f.dtype), w_f,
                            preferred_element_type=jnp.float32)

    out = jnp.maximum(acc + b_ref[...], 0.0)                      # bias + ReLU
    out_ref[...] = out.astype(out_ref.dtype)


def feature_embed_forward(f_list, tables, w, b, *, drop_ratio=0.0,
                          training=True, rng_key=None, tok_block=512):
    """Pallas implementation of FeatureEmbed.forward.

    f_list : (..., F) integer feature ids
    tables : list of F embedding tables, each (V_f, D)
    w, b   : linear_out parameters, shapes (F*D, D) and (D,)
    """
    f_list = jnp.asarray(f_list)
    num_features = f_list.shape[-1]
    assert len(tables) == num_features
    embed_dim = tables[0].shape[1]
    lead = f_list.shape[:-1]
    n_tokens = math.prod(lead) if lead else 1

    ids = f_list.reshape(n_tokens, num_features).astype(jnp.int32)
    tb, n_pad = _choose_block(n_tokens, tok_block)
    if n_pad != n_tokens:
        ids = jnp.pad(ids, ((0, n_pad - n_tokens), (0, 0)))

    # Pad each vocab to a multiple of 128 so the one-hot matmul is tile-aligned.
    tables_p = []
    for t in tables:
        t = jnp.asarray(t)
        vp = _round_up(t.shape[0], 128)
        tables_p.append(jnp.pad(t, ((0, vp - t.shape[0]), (0, 0)))
                        if vp != t.shape[0] else t)

    w = jnp.asarray(w)
    b2 = jnp.asarray(b).reshape(1, embed_dim)

    use_dropout = bool(training) and float(drop_ratio) > 0.0
    keep_scale = 1.0 / (1.0 - float(drop_ratio)) if use_dropout else 1.0
    # Signed-int32 threshold equivalent to `u32_bits < p * 2**32  => drop`.
    drop_threshold = int(round(float(drop_ratio) * 2.0 ** 32)) - 2 ** 31

    grid = (n_pad // tb,)
    in_specs = [pl.BlockSpec((tb, num_features), lambda i: (i, 0))]
    args = [ids]
    for t in tables_p:                      # tables resident in VMEM
        in_specs.append(pl.BlockSpec(t.shape, lambda i: (0, 0)))
        args.append(t)
    in_specs.append(pl.BlockSpec(w.shape, lambda i: (0, 0)))
    args.append(w)
    in_specs.append(pl.BlockSpec((1, embed_dim), lambda i: (0, 0)))
    args.append(b2)
    if use_dropout:
        if rng_key is None:
            rng_key = jax.random.PRNGKey(0)
        bits = jax.lax.bitcast_convert_type(
            jax.random.bits(rng_key, (num_features, n_pad, embed_dim),
                            dtype=jnp.uint32),
            jnp.int32)
        in_specs.append(
            pl.BlockSpec((num_features, tb, embed_dim), lambda i: (0, i, 0)))
        args.append(bits)

    kernel = functools.partial(
        _feature_embed_kernel,
        num_features=num_features, embed_dim=embed_dim,
        use_dropout=use_dropout, drop_threshold=drop_threshold,
        keep_scale=keep_scale)

    out = pl.pallas_call(
        kernel,
        out_shape=jax.ShapeDtypeStruct((n_pad, embed_dim), w.dtype),
        grid=grid,
        in_specs=in_specs,
        out_specs=pl.BlockSpec((tb, embed_dim), lambda i: (i, 0)),
        compiler_params=pltpu.CompilerParams(
            dimension_semantics=("parallel",)),
    )(*args)

    return out[:n_tokens].reshape(*lead, embed_dim)


if __name__ == "__main__":
    key = jax.random.PRNGKey(0)
    k_tbl, k_ids, k_w, k_b, k_drop = jax.random.split(key, 5)

    features_num_embed = [7, 11, 13]
    D = 64
    B, S = 2, 8
    F = len(features_num_embed)
    drop_ratio = 0.1

    tbl_keys = jax.random.split(k_tbl, F)
    tables = [jax.random.normal(tbl_keys[i], (features_num_embed[i], D),
                                dtype=jnp.float32)
              for i in range(F)]
    w = jax.random.normal(k_w, (F * D, D), dtype=jnp.float32) * 0.1
    b = jax.random.normal(k_b, (D,), dtype=jnp.float32) * 0.1
    id_keys = jax.random.split(k_ids, F)
    f_list = jnp.stack(
        [jax.random.randint(id_keys[i], (B, S), 0, features_num_embed[i],
                            dtype=jnp.int32) for i in range(F)],
        axis=-1)                                             # (B, S, F)

    # ---- eval mode: dropout is identity, compare vs pure-JAX reference ----
    out_eval = feature_embed_forward(f_list, tables, w, b,
                                     drop_ratio=drop_ratio, training=False)
    out_eval = jax.block_until_ready(out_eval)
    emb_ref = jnp.concatenate([tables[i][f_list[..., i]] for i in range(F)],
                              axis=-1)                       # (B, S, F*D)
    ref_eval = jnp.maximum(emb_ref @ w + b, 0.0)
    assert out_eval.shape == (B, S, D)
    assert jnp.allclose(out_eval, ref_eval, atol=3e-2, rtol=3e-2), \
        "eval-mode mismatch"

    # ---- training mode: reconstruct the exact same mask and compare ----
    out_train = feature_embed_forward(f_list, tables, w, b,
                                      drop_ratio=drop_ratio, training=True,
                                      rng_key=k_drop)
    out_train = jax.block_until_ready(out_train)

    n_tokens = B * S
    _, n_pad = _choose_block(n_tokens, 512)
    bits_ref = jax.lax.bitcast_convert_type(
        jax.random.bits(k_drop, (F, n_pad, D), dtype=jnp.uint32), jnp.int32)
    thr = int(round(drop_ratio * 2.0 ** 32)) - 2 ** 31
    keep = (bits_ref >= thr)[:, :n_tokens, :].reshape(F, B, S, D)
    keep_rate = jnp.mean(keep.astype(jnp.float32))
    assert 0.8 < float(keep_rate) < 0.97, "dropout keep-rate off"

    scale = 1.0 / (1.0 - drop_ratio)
    dropped = [jnp.where(keep[i], tables[i][f_list[..., i]] * scale, 0.0)
               for i in range(F)]
    ref_train = jnp.maximum(jnp.concatenate(dropped, axis=-1) @ w + b, 0.0)
    assert out_train.shape == (B, S, D)
    assert jnp.allclose(out_train, ref_train, atol=3e-2, rtol=3e-2), \
        "training-mode (dropout) mismatch"

    print("KERNEL_OK")
</pallas_src>

<mosaic_0001>
module attributes {stable_mosaic.version = 11 : i64} {
  func.func @_feature_embed_kernel(%arg0: i32, %arg1: memref<16x3xi32, #tpu.memory_space<vmem>>, %arg2: memref<128x64xf32, #tpu.memory_space<vmem>>, %arg3: memref<128x64xf32, #tpu.memory_space<vmem>>, %arg4: memref<128x64xf32, #tpu.memory_space<vmem>>, %arg5: memref<192x64xf32, #tpu.memory_space<vmem>>, %arg6: memref<1x64xf32, #tpu.memory_space<vmem>>, %arg7: memref<16x64xf32, #tpu.memory_space<vmem>>) attributes {dimension_semantics = [#tpu.dimension_semantics<parallel>], iteration_bounds = array<i64: 1>, scalar_prefetch = 0 : i64, scratch_operands = 0 : i64, tpu.core_type = #tpu.core_type<tc>, window_params = [{transform_indices = @transform_0, window_bounds = array<i64: 16, 3>}, {pipeline_mode = #tpu.pipeline_mode<synchronous>, transform_indices = @transform_1, window_bounds = array<i64: 128, 64>}, {pipeline_mode = #tpu.pipeline_mode<synchronous>, transform_indices = @transform_2, window_bounds = array<i64: 128, 64>}, {pipeline_mode = #tpu.pipeline_mode<synchronous>, transform_indices = @transform_3, window_bounds = array<i64: 128, 64>}, {pipeline_mode = #tpu.pipeline_mode<synchronous>, transform_indices = @transform_4, window_bounds = array<i64: 192, 64>}, {pipeline_mode = #tpu.pipeline_mode<synchronous>, transform_indices = @transform_5, window_bounds = array<i64: 1, 64>}, {transform_indices = @transform_6, window_bounds = array<i64: 16, 64>}]} {
    %c0 = arith.constant 0 : index
    %c0_0 = arith.constant 0 : index
    %0 = vector.load %arg1[%c0, %c0_0] : memref<16x3xi32, #tpu.memory_space<vmem>>, vector<16x3xi32>
    %cst = arith.constant 0.000000e+00 : f32
    %1 = vector.broadcast %cst : f32 to vector<16x64xf32>
    %c0_1 = arith.constant 0 : index
    %c0_2 = arith.constant 0 : index
    %2 = vector.load %arg2[%c0_1, %c0_2] : memref<128x64xf32, #tpu.memory_space<vmem>>, vector<128x64xf32>
    %3 = tpu.iota {dimensions = array<i32: 1>} : vector<16x128xi32>
    %4 = vector.extract_strided_slice %0 {offsets = [0, 0], sizes = [16, 1], strides = [1, 1]} : vector<16x3xi32> to vector<16x1xi32>
    %5 = vector.broadcast %4 : vector<16x1xi32> to vector<16x128xi32>
    %6 = arith.cmpi eq, %5, %3 : vector<16x128xi32>
    %7 = arith.extui %6 : vector<16x128xi1> to vector<16x128xi32>
    %8 = arith.sitofp %7 : vector<16x128xi32> to vector<16x128xf32>
    %cst_3 = arith.constant dense<0.000000e+00> : vector<16x64xf32>
    %9 = tpu.matmul %8, %2, %cst_3 {dimension_numbers = #tpu.dot_dimension_numbers<[1], [0], [0], [1], [0, 0, 1, 1], [], []>} : vector<16x128xf32>, vector<128x64xf32>, vector<16x64xf32> -> vector<16x64xf32>
    %c0_4 = arith.constant 0 : index
    %c0_5 = arith.constant 0 : index
    %10 = vector.load %arg5[%c0_4, %c0_5] : memref<192x64xf32, #tpu.memory_space<vmem>>, vector<64x64xf32>
    %cst_6 = arith.constant dense<0.000000e+00> : vector<16x64xf32>
    %11 = tpu.matmul %9, %10, %cst_6 {dimension_numbers = #tpu.dot_dimension_numbers<[1], [0], [0], [1], [0, 0, 1, 1], [], []>} : vector<16x64xf32>, vector<64x64xf32>, vector<16x64xf32> -> vector<16x64xf32>
    %12 = arith.addf %1, %11 : vector<16x64xf32>
    %c0_7 = arith.constant 0 : index
    %c0_8 = arith.constant 0 : index
    %13 = vector.load %arg3[%c0_7, %c0_8] : memref<128x64xf32, #tpu.memory_space<vmem>>, vector<128x64xf32>
    %14 = tpu.iota {dimensions = array<i32: 1>} : vector<16x128xi32>
    %15 = vector.extract_strided_slice %0 {offsets = [0, 1], sizes = [16, 1], strides = [1, 1]} : vector<16x3xi32> to vector<16x1xi32>
    %16 = vector.broadcast %15 : vector<16x1xi32> to vector<16x128xi32>
    %17 = arith.cmpi eq, %16, %14 : vector<16x128xi32>
    %18 = arith.extui %17 : vector<16x128xi1> to vector<16x128xi32>
    %19 = arith.sitofp %18 : vector<16x128xi32> to vector<16x128xf32>
    %cst_9 = arith.constant dense<0.000000e+00> : vector<16x64xf32>
    %20 = tpu.matmul %19, %13, %cst_9 {dimension_numbers = #tpu.dot_dimension_numbers<[1], [0], [0], [1], [0, 0, 1, 1], [], []>} : vector<16x128xf32>, vector<128x64xf32>, vector<16x64xf32> -> vector<16x64xf32>
    %c64 = arith.constant 64 : index
    %c0_10 = arith.constant 0 : index
    %21 = vector.load %arg5[%c64, %c0_10] : memref<192x64xf32, #tpu.memory_space<vmem>>, vector<64x64xf32>
    %cst_11 = arith.constant dense<0.000000e+00> : vector<16x64xf32>
    %22 = tpu.matmul %20, %21, %cst_11 {dimension_numbers = #tpu.dot_dimension_numbers<[1], [0], [0], [1], [0, 0, 1, 1], [], []>} : vector<16x64xf32>, vector<64x64xf32>, vector<16x64xf32> -> vector<16x64xf32>
    %23 = arith.addf %12, %22 : vector<16x64xf32>
    %c0_12 = arith.constant 0 : index
    %c0_13 = arith.constant 0 : index
    %24 = vector.load %arg4[%c0_12, %c0_13] : memref<128x64xf32, #tpu.memory_space<vmem>>, vector<128x64xf32>
    %25 = tpu.iota {dimensions = array<i32: 1>} : vector<16x128xi32>
    %26 = vector.extract_strided_slice %0 {offsets = [0, 2], sizes = [16, 1], strides = [1, 1]} : vector<16x3xi32> to vector<16x1xi32>
    %27 = vector.broadcast %26 : vector<16x1xi32> to vector<16x128xi32>
    %28 = arith.cmpi eq, %27, %25 : vector<16x128xi32>
    %29 = arith.extui %28 : vector<16x128xi1> to vector<16x128xi32>
    %30 = arith.sitofp %29 : vector<16x128xi32> to vector<16x128xf32>
    %cst_14 = arith.constant dense<0.000000e+00> : vector<16x64xf32>
    %31 = tpu.matmul %30, %24, %cst_14 {dimension_numbers = #tpu.dot_dimension_numbers<[1], [0], [0], [1], [0, 0, 1, 1], [], []>} : vector<16x128xf32>, vector<128x64xf32>, vector<16x64xf32> -> vector<16x64xf32>
    %c128 = arith.constant 128 : index
    %c0_15 = arith.constant 0 : index
    %32 = vector.load %arg5[%c128, %c0_15] : memref<192x64xf32, #tpu.memory_space<vmem>>, vector<64x64xf32>
    %cst_16 = arith.constant dense<0.000000e+00> : vector<16x64xf32>
    %33 = tpu.matmul %31, %32, %cst_16 {dimension_numbers = #tpu.dot_dimension_numbers<[1], [0], [0], [1], [0, 0, 1, 1], [], []>} : vector<16x64xf32>, vector<64x64xf32>, vector<16x64xf32> -> vector<16x64xf32>
    %34 = arith.addf %23, %33 : vector<16x64xf32>
    %c0_17 = arith.constant 0 : index
    %c0_18 = arith.constant 0 : index
    %35 = vector.load %arg6[%c0_17, %c0_18] : memref<1x64xf32, #tpu.memory_space<vmem>>, vector<1x64xf32>
    %36 = vector.broadcast %35 : vector<1x64xf32> to vector<16x64xf32>
    %37 = arith.addf %34, %36 : vector<16x64xf32>
    %cst_19 = arith.constant 0.000000e+00 : f32
    %38 = vector.broadcast %cst_19 : f32 to vector<16x64xf32>
    %39 = arith.maximumf %37, %38 : vector<16x64xf32>
    %c0_20 = arith.constant 0 : index
    %c0_21 = arith.constant 0 : index
    %40 = vector.load %arg7[%c0_20, %c0_21] : memref<16x64xf32, #tpu.memory_space<vmem>>, vector<16x64xf32>
    tpu.vector_store %arg7[%c0_20, %c0_21], %39 {strides = array<i32>} : memref<16x64xf32, #tpu.memory_space<vmem>>, vector<16x64xf32>,
    return
  }
  func.func @transform_0(%arg0: i32) -> (i32, i32) {
    %c0_i32 = arith.constant 0 : i32
    %c0_i32_0 = arith.constant 0 : i32
    return %arg0, %c0_i32 : i32, i32
  }
  func.func @transform_1(%arg0: i32) -> (i32, i32) {
    %c0_i32 = arith.constant 0 : i32
    %c0_i32_0 = arith.constant 0 : i32
    %c0_i32_1 = arith.constant 0 : i32
    return %c0_i32, %c0_i32_0 : i32, i32
  }
  func.func @transform_2(%arg0: i32) -> (i32, i32) {
    %c0_i32 = arith.constant 0 : i32
    %c0_i32_0 = arith.constant 0 : i32
    %c0_i32_1 = arith.constant 0 : i32
    return %c0_i32, %c0_i32_0 : i32, i32
  }
  func.func @transform_3(%arg0: i32) -> (i32, i32) {
    %c0_i32 = arith.constant 0 : i32
    %c0_i32_0 = arith.constant 0 : i32
    %c0_i32_1 = arith.constant 0 : i32
    return %c0_i32, %c0_i32_0 : i32, i32
  }
  func.func @transform_4(%arg0: i32) -> (i32, i32) {
    %c0_i32 = arith.constant 0 : i32
    %c0_i32_0 = arith.constant 0 : i32
    %c0_i32_1 = arith.constant 0 : i32
    return %c0_i32, %c0_i32_0 : i32, i32
  }
  func.func @transform_5(%arg0: i32) -> (i32, i32) {
    %c0_i32 = arith.constant 0 : i32
    %c0_i32_0 = arith.constant 0 : i32
    %c0_i32_1 = arith.constant 0 : i32
    return %c0_i32, %c0_i32_0 : i32, i32
  }
  func.func @transform_6(%arg0: i32) -> (i32, i32) {
    %c0_i32 = arith.constant 0 : i32
    %c0_i32_0 = arith.constant 0 : i32
    return %arg0, %c0_i32 : i32, i32
  }
}

</mosaic_0001>

<llo_original>
// kernel: tpu_custom_call.1
$region0: #{tpu_custom_call.1}
  #allocation0 [shape = 'u32[]', space=smem, size = 0x4, offset = 0x4, fixed_abs, tag = 'smem constant byte address 0x4 - core index']
  #allocation1 [shape = 'u32[144,128]{1,0:T(1,128)}', space=vmem, size = 0x12000, scoped, tag = 'internal scratch']
  %s0 = inlined_call_operand.vmem [shape: s32[16,3], index: 0, kind: input, shape index: {}]
  %s1 = inlined_call_operand.vmem [shape: f32[128,64], index: 1, kind: input, shape index: {}]
  %s2 = inlined_call_operand.vmem [shape: f32[128,64], index: 2, kind: input, shape index: {}]
  %s3 = inlined_call_operand.vmem [shape: f32[128,64], index: 3, kind: input, shape index: {}]
  %s4 = inlined_call_operand.vmem [shape: f32[192,64], index: 4, kind: input, shape index: {}]
  %s5 = inlined_call_operand.vmem [shape: f32[1,64], index: 5, kind: input, shape index: {}]
  %s6 = inlined_call_operand.hbm [shape: f32[16,64], index: 6, kind: output, shape index: {}]
  %s7 = sld [smem:[#allocation0]]
  $region34: #{tpu_custom_call.1} parent=0
    _
  %s9 = ssub.s32 1, %s7
  %s10 = scalar_select 0, %s9, %s7
  $region1: #{tpu_custom_call.1} parent=0
    #allocation2 [shape = 'u8[8192]{0}', space=vmem, size = 0x2000, scoped, tag = 'output window, operand 0, single buffered']
    #allocation3 [shape = 's32[1]{0}', space=sflag, size = 0x4, scoped, tag = 'scoped memory for tpu_custom_call.1']
    %11 = vsyncpa [#allocation3], 0
    // Predicated region
    $region2: #{tpu_custom_call.1} parent=1 // pred_check
      _
    $region3: #{tpu_custom_call.1} parent=1 // pred_check_branch
      %13 = sbr.rel (0) target = $region5
    $region4: #{tpu_custom_call.1} parent=1 // pred_region
      _
    $region5: #{tpu_custom_call.1} parent=1 // pred_fallthru
      _
    // Predicated region
    $region6: #{tpu_custom_call.1} parent=1 // pred_check
      _
    $region7: #{tpu_custom_call.1} parent=1 // pred_check_branch
      %15 = sbr.rel (0) target = $region9
    $region8: #{tpu_custom_call.1} parent=1 // pred_region
      _
    $region9: #{tpu_custom_call.1} parent=1 // pred_fallthru
      _
    // Predicated region
    $region10: #{tpu_custom_call.1} parent=1 // pred_check
      _
    $region11: #{tpu_custom_call.1} parent=1 // pred_check_branch
      %17 = sbr.rel (0) target = $region13
    $region12: #{tpu_custom_call.1} parent=1 // pred_region
      _
    $region13: #{tpu_custom_call.1} parent=1 // pred_fallthru
      _
    // Predicated region
    $region14: #{tpu_custom_call.1} parent=1 // pred_check
      _
    $region15: #{tpu_custom_call.1} parent=1 // pred_check_branch
      %19 = sbr.rel (0) target = $region17
    $region16: #{tpu_custom_call.1} parent=1 // pred_region
      _
    $region17: #{tpu_custom_call.1} parent=1 // pred_fallthru
      _
    // Predicated region
    $region18: #{tpu_custom_call.1} parent=1 // pred_check
      _
    $region19: #{tpu_custom_call.1} parent=1 // pred_check_branch
      %21 = sbr.rel (0) target = $region21
    $region20: #{tpu_custom_call.1} parent=1 // pred_region
      _
    $region21: #{tpu_custom_call.1} parent=1 // pred_fallthru
      _
    // Predicated region
    $region22: #{tpu_custom_call.1} parent=1 // pred_check
      _
    $region23: #{tpu_custom_call.1} parent=1 // pred_check_branch
      %23 = sbr.rel (0) target = $region25
    $region24: #{tpu_custom_call.1} parent=1 // pred_region
      _
    $region25: #{tpu_custom_call.1} parent=1 // pred_fallthru
      _
    %v24 = vld [vmem:[%s0] sm:$0xff]
    %v25 = vld [vmem:[%s0 + $0x8] sm:$0xff]
    %v26 = vld [vmem:[%s1] sm:$0xff]
    %v27 = vld [vmem:[%s1 + $0x8] sm:$0xff]
    %v28 = vld [vmem:[%s1 + $0x10] sm:$0xff]
    %v29 = vld [vmem:[%s1 + $0x18] sm:$0xff]
    %v30 = vld [vmem:[%s1 + $0x20] sm:$0xff]
    %v31 = vld [vmem:[%s1 + $0x28] sm:$0xff]
    %v32 = vld [vmem:[%s1 + $0x30] sm:$0xff]
    %v33 = vld [vmem:[%s1 + $0x38] sm:$0xff]
    %v34 = vld [vmem:[%s1 + $0x40] sm:$0xff]
    %v35 = vld [vmem:[%s1 + $0x48] sm:$0xff]
    %v36 = vld [vmem:[%s1 + $0x50] sm:$0xff]
    %v37 = vld [vmem:[%s1 + $0x58] sm:$0xff]
    %v38 = vld [vmem:[%s1 + $0x60] sm:$0xff]
    %v39 = vld [vmem:[%s1 + $0x68] sm:$0xff]
    %v40 = vld [vmem:[%s1 + $0x70] sm:$0xff]
    %v41 = vld [vmem:[%s1 + $0x78] sm:$0xff]
    %v42 = vlaneseq
    %v43 = vand.u32 %v42, 127
    %44 = vset.pattern.permute.xlu0 0
    %45 = vperm.xlu0 %44, %v24
    %v46 = vpop.permute.xlu0 %45
    %47 = vset.pattern.permute.xlu0 0
    %48 = vperm.xlu0 %47, %v25
    %v49 = vpop.permute.xlu0 %48
    %vm50 = vcmp.eq.s32.totalorder %v46, %v43
    %vm51 = vcmp.eq.s32.totalorder %v49, %v43
    %v52 = vsel %vm50, 1, 0
    %v53 = vsel %vm51, 1, 0
    %v54 = vcvt.s32.f32 %v52
    %v55 = vcvt.s32.f32 %v53
    %56 = vmatprep.subr.mxu0 0.0
    %57 = vmatpush1.msra.mxu0 %v26
    %58 = vmatprep.subr.mxu0 0.0
    %59 = vmatpush1.msra.mxu0 %v27
    %60 = vmatprep.subr.mxu0 0.0
    %61 = vmatpush1.msra.mxu0 %v28
    %62 = vmatprep.subr.mxu0 0.0
    %63 = vmatpush1.msra.mxu0 %v29
    %64 = vmatprep.subr.mxu0 0.0
    %65 = vmatpush1.msra.mxu0 %v30
    %66 = vmatprep.subr.mxu0 0.0
    %67 = vmatpush1.msra.mxu0 %v31
    %68 = vmatprep.subr.mxu0 0.0
    %69 = vmatpush1.msra.mxu0 %v32
    %70 = vmatprep.subr.mxu0 0.0
    %71 = vmatpush1.msra.mxu0 %v33
    %72 = vmatprep.subr.mxu0 0.0
    %73 = vmatpush1.msra.mxu0 %v34
    %74 = vmatprep.subr.mxu0 0.0
    %75 = vmatpush1.msra.mxu0 %v35
    %76 = vmatprep.subr.mxu0 0.0
    %77 = vmatpush1.msra.mxu0 %v36
    %78 = vmatprep.subr.mxu0 0.0
    %79 = vmatpush1.msra.mxu0 %v37
    %80 = vmatprep.subr.mxu0 0.0
    %81 = vmatpush1.msra.mxu0 %v38
    %82 = vmatprep.subr.mxu0 0.0
    %83 = vmatpush1.msra.mxu0 %v39
    %84 = vmatprep.subr.mxu0 0.0
    %85 = vmatpush1.msra.mxu0 %v40
    %86 = vmatprep.subr.mxu0 0.0
    %87 = vmatpush1.msra.mxu0 %v41
    %88 = vmatprep.subr.mxu0 0.0
    %89 = vmatpush1.msra.mxu0 0.0
    %90 = vmatprep.subr.mxu0 0.0
    %91 = vmatpush1.msra.mxu0 0.0
    %92 = vmatprep.subr.mxu0 0.0
    %93 = vmatpush1.msra.mxu0 0.0
    %94 = vmatprep.subr.mxu0 0.0
    %95 = vmatpush1.msra.mxu0 0.0
    %96 = vmatprep.subr.mxu0 0.0
    %97 = vmatpush1.msra.mxu0 0.0
    %98 = vmatprep.subr.mxu0 0.0
    %99 = vmatpush1.msra.mxu0 0.0
    %100 = vmatprep.subr.mxu0 0.0
    %101 = vmatpush1.msra.mxu0 0.0
    %102 = vmatprep.subr.mxu0 0.0
    %103 = vmatpush1.msra.mxu0 0.0
    %104 = vmatprep.subr.mxu0 0.0
    %105 = vmatpush1.msra.mxu0 0.0
    %106 = vmatprep.subr.mxu0 0.0
    %107 = vmatpush1.msra.mxu0 0.0
    %108 = vmatprep.subr.mxu0 0.0
    %109 = vmatpush1.msra.mxu0 0.0
    %110 = vmatprep.subr.mxu0 0.0
    %111 = vmatpush1.msra.mxu0 0.0
    %112 = vmatprep.subr.mxu0 0.0
    %113 = vmatpush1.msra.mxu0 0.0
    %114 = vmatprep.subr.mxu0 0.0
    %115 = vmatpush1.msra.mxu0 0.0
    %116 = vmatprep.subr.mxu0 0.0
    %117 = vmatpush1.msra.mxu0 0.0
    %118 = vmatprep.subr.mxu0 0.0
    %119 = vmatpush1.msra.mxu0 0.0
    %120 = vmatprep.mubr.f32.mxu0 0.0
    %121 = vmatmul.mubr.f32.gmra.mrb[0].mxu0 %v54
    %v122 = vpop.f32.mrb[0].mxu0
    %v123 = vadd.f32 0.0, %v122
    %v124 = vpop.f32.mrb[0].mxu0
    %125 = vmatprep.mubr.f32.mxu0 0.0
    %126 = vmatmul.mubr.f32.gmra.mrb[0].mxu0 %v55
    %v127 = vpop.f32.mrb[0].mxu0
    %v128 = vadd.f32 0.0, %v127
    %v129 = vpop.f32.mrb[0].mxu0
    %130 = vdwg.mxu0
    %v131 = vld [vmem:[%s4] sm:$0xff]
    %v132 = vld [vmem:[%s4 + $0x8] sm:$0xff]
    %v133 = vld [vmem:[%s4 + $0x10] sm:$0xff]
    %v134 = vld [vmem:[%s4 + $0x18] sm:$0xff]
    %v135 = vld [vmem:[%s4 + $0x20] sm:$0xff]
    %v136 = vld [vmem:[%s4 + $0x28] sm:$0xff]
    %v137 = vld [vmem:[%s4 + $0x30] sm:$0xff]
    %v138 = vld [vmem:[%s4 + $0x38] sm:$0xff]
    %v139 = vld [vmem:[%s2] sm:$0xff]
    %v140 = vld [vmem:[%s2 + $0x8] sm:$0xff]
    %v141 = vld [vmem:[%s2 + $0x10] sm:$0xff]
    %v142 = vld [vmem:[%s2 + $0x18] sm:$0xff]
    %v143 = vld [vmem:[%s2 + $0x20] sm:$0xff]
    %v144 = vld [vmem:[%s2 + $0x28] sm:$0xff]
    %v145 = vld [vmem:[%s2 + $0x30] sm:$0xff]
    %v146 = vld [vmem:[%s2 + $0x38] sm:$0xff]
    %v147 = vld [vmem:[%s2 + $0x40] sm:$0xff]
    %v148 = vld [vmem:[%s2 + $0x48] sm:$0xff]
    %v149 = vld [vmem:[%s2 + $0x50] sm:$0xff]
    %v150 = vld [vmem:[%s2 + $0x58] sm:$0xff]
    %v151 = vld [vmem:[%s2 + $0x60] sm:$0xff]
    %v152 = vld [vmem:[%s2 + $0x68] sm:$0xff]
    %v153 = vld [vmem:[%s2 + $0x70] sm:$0xff]
    %v154 = vld [vmem:[%s2 + $0x78] sm:$0xff]
    %155 = vset.pattern.permute.xlu0 1
    %156 = vperm.xlu0 %155, %v24
    %v157 = vpop.permute.xlu0 %156
    %158 = vset.pattern.permute.xlu0 1
    %159 = vperm.xlu0 %158, %v25
    %v160 = vpop.permute.xlu0 %159
    %vm161 = vcmp.eq.s32.totalorder %v157, %v43
    %vm162 = vcmp.eq.s32.totalorder %v160, %v43
    %v163 = vsel %vm161, 1, 0
    %v164 = vsel %vm162, 1, 0
    %v165 = vcvt.s32.f32 %v163
    %v166 = vcvt.s32.f32 %v164
    %167 = vmatprep.subr.mxu0 0.0
    %168 = vmatpush1.msra.mxu0 %v139
    %169 = vmatprep.subr.mxu0 0.0
    %170 = vmatpush1.msra.mxu0 %v140
    %171 = vmatprep.subr.mxu0 0.0
    %172 = vmatpush1.msra.mxu0 %v141
    %173 = vmatprep.subr.mxu0 0.0
    %174 = vmatpush1.msra.mxu0 %v142
    %175 = vmatprep.subr.mxu0 0.0
    %176 = vmatpush1.msra.mxu0 %v143
    %177 = vmatprep.subr.mxu0 0.0
    %178 = vmatpush1.msra.mxu0 %v144
    %179 = vmatprep.subr.mxu0 0.0
    %180 = vmatpush1.msra.mxu0 %v145
    %181 = vmatprep.subr.mxu0 0.0
    %182 = vmatpush1.msra.mxu0 %v146
    %183 = vmatprep.subr.mxu0 0.0
    %184 = vmatpush1.msra.mxu0 %v147
    %185 = vmatprep.subr.mxu0 0.0
    %186 = vmatpush1.msra.mxu0 %v148
    %187 = vmatprep.subr.mxu0 0.0
    %188 = vmatpush1.msra.mxu0 %v149
    %189 = vmatprep.subr.mxu0 0.0
    %190 = vmatpush1.msra.mxu0 %v150
    %191 = vmatprep.subr.mxu0 0.0
    %192 = vmatpush1.msra.mxu0 %v151
    %193 = vmatprep.subr.mxu0 0.0
    %194 = vmatpush1.msra.mxu0 %v152
    %195 = vmatprep.subr.mxu0 0.0
    %196 = vmatpush1.msra.mxu0 %v153
    %197 = vmatprep.subr.mxu0 0.0
    %198 = vmatpush1.msra.mxu0 %v154
    %199 = vmatprep.subr.mxu0 0.0
    %200 = vmatpush1.msra.mxu0 0.0
    %201 = vmatprep.subr.mxu0 0.0
    %202 = vmatpush1.msra.mxu0 0.0
    %203 = vmatprep.subr.mxu0 0.0
    %204 = vmatpush1.msra.mxu0 0.0
    %205 = vmatprep.subr.mxu0 0.0
    %206 = vmatpush1.msra.mxu0 0.0
    %207 = vmatprep.subr.mxu0 0.0
    %208 = vmatpush1.msra.mxu0 0.0
    %209 = vmatprep.subr.mxu0 0.0
    %210 = vmatpush1.msra.mxu0 0.0
    %211 = vmatprep.subr.mxu0 0.0
    %212 = vmatpush1.msra.mxu0 0.0
    %213 = vmatprep.subr.mxu0 0.0
    %214 = vmatpush1.msra.mxu0 0.0
    %215 = vmatprep.subr.mxu0 0.0
    %216 = vmatpush1.msra.mxu0 0.0
    %217 = vmatprep.subr.mxu0 0.0
    %218 = vmatpush1.msra.mxu0 0.0
    %219 = vmatprep.subr.mxu0 0.0
    %220 = vmatpush1.msra.mxu0 0.0
    %221 = vmatprep.subr.mxu0 0.0
    %222 = vmatpush1.msra.mxu0 0.0
    %223 = vmatprep.subr.mxu0 0.0
    %224 = vmatpush1.msra.mxu0 0.0
    %225 = vmatprep.subr.mxu0 0.0
    %226 = vmatpush1.msra.mxu0 0.0
    %227 = vmatprep.subr.mxu0 0.0
    %228 = vmatpush1.msra.mxu0 0.0
    %229 = vmatprep.subr.mxu0 0.0
    %230 = vmatpush1.msra.mxu0 0.0
    %231 = vmatprep.mubr.f32.mxu0 0.0
    %232 = vmatmul.mubr.f32.gmra.mrb[0].mxu0 %v165
    %v233 = vpop.f32.mrb[0].mxu0
    %v234 = vadd.f32 0.0, %v233
    %v235 = vpop.f32.mrb[0].mxu0
    %236 = vmatprep.mubr.f32.mxu0 0.0
    %237 = vmatmul.mubr.f32.gmra.mrb[0].mxu0 %v166
    %v238 = vpop.f32.mrb[0].mxu0
    %v239 = vadd.f32 0.0, %v238
    %v240 = vpop.f32.mrb[0].mxu0
    %241 = vdwg.mxu0
    %v242 = vld [vmem:[%s4 + $0x40] sm:$0xff]
    %v243 = vld [vmem:[%s4 + $0x48] sm:$0xff]
    %v244 = vld [vmem:[%s4 + $0x50] sm:$0xff]
    %v245 = vld [vmem:[%s4 + $0x58] sm:$0xff]
    %v246 = vld [vmem:[%s4 + $0x60] sm:$0xff]
    %v247 = vld [vmem:[%s4 + $0x68] sm:$0xff]
    %v248 = vld [vmem:[%s4 + $0x70] sm:$0xff]
    %v249 = vld [vmem:[%s4 + $0x78] sm:$0xff]
    %vm250 = vcmask 523264
    %v252 = vsel %vm250, %v234, 0
    %v255 = vsel %vm250, %v239, 0
    %257 = vmatprep.subr.mxu0 0.0
    %258 = vmatpush1.msra.mxu0 %v242
    %259 = vmatprep.subr.mxu0 0.0
    %260 = vmatpush1.msra.mxu0 %v243
    %261 = vmatprep.subr.mxu0 0.0
    %262 = vmatpush1.msra.mxu0 %v244
    %263 = vmatprep.subr.mxu0 0.0
    %264 = vmatpush1.msra.mxu0 %v245
    %265 = vmatprep.subr.mxu0 0.0
    %266 = vmatpush1.msra.mxu0 %v246
    %267 = vmatprep.subr.mxu0 0.0
    %268 = vmatpush1.msra.mxu0 %v247
    %269 = vmatprep.subr.mxu0 0.0
    %270 = vmatpush1.msra.mxu0 %v248
    %271 = vmatprep.subr.mxu0 0.0
    %272 = vmatpush1.msra.mxu0 %v249
    %273 = vmatprep.subr.mxu0 0.0
    %274 = vmatpush1.msra.mxu0 0.0
    %275 = vmatprep.subr.mxu0 0.0
    %276 = vmatpush1.msra.mxu0 0.0
    %277 = vmatprep.subr.mxu0 0.0
    %278 = vmatpush1.msra.mxu0 0.0
    %279 = vmatprep.subr.mxu0 0.0
    %280 = vmatpush1.msra.mxu0 0.0
    %281 = vmatprep.subr.mxu0 0.0
    %282 = vmatpush1.msra.mxu0 0.0
    %283 = vmatprep.subr.mxu0 0.0
    %284 = vmatpush1.msra.mxu0 0.0
    %285 = vmatprep.subr.mxu0 0.0
    %286 = vmatpush1.msra.mxu0 0.0
    %287 = vmatprep.subr.mxu0 0.0
    %288 = vmatpush1.msra.mxu0 0.0
    %289 = vmatprep.subr.mxu0 0.0
    %290 = vmatpush1.msra.mxu0 0.0
    %291 = vmatprep.subr.mxu0 0.0
    %292 = vmatpush1.msra.mxu0 0.0
    %293 = vmatprep.subr.mxu0 0.0
    %294 = vmatpush1.msra.mxu0 0.0
    %295 = vmatprep.subr.mxu0 0.0
    %296 = vmatpush1.msra.mxu0 0.0
    %297 = vmatprep.subr.mxu0 0.0
    %298 = vmatpush1.msra.mxu0 0.0
    %299 = vmatprep.subr.mxu0 0.0
    %300 = vmatpush1.msra.mxu0 0.0
    %301 = vmatprep.subr.mxu0 0.0
    %302 = vmatpush1.msra.mxu0 0.0
    %303 = vmatprep.subr.mxu0 0.0
    %304 = vmatpush1.msra.mxu0 0.0
    %305 = vmatprep.subr.mxu0 0.0
    %306 = vmatpush1.msra.mxu0 0.0
    %307 = vmatprep.subr.mxu0 0.0
    %308 = vmatpush1.msra.mxu0 0.0
    %309 = vmatprep.subr.mxu0 0.0
    %310 = vmatpush1.msra.mxu0 0.0
    %311 = vmatprep.subr.mxu0 0.0
    %312 = vmatpush1.msra.mxu0 0.0
    %313 = vmatprep.subr.mxu0 0.0
    %314 = vmatpush1.msra.mxu0 0.0
    %315 = vmatprep.subr.mxu0 0.0
    %316 = vmatpush1.msra.mxu0 0.0
    %317 = vmatprep.subr.mxu0 0.0
    %318 = vmatpush1.msra.mxu0 0.0
    %319 = vmatprep.subr.mxu0 0.0
    %320 = vmatpush1.msra.mxu0 0.0
    %321 = vmatprep.mubr.f32.mxu0 0.0
    %322 = vmatmul.mubr.f32.gmra.mrb[0].mxu0 %v252
    %v323 = vpop.f32.mrb[0].mxu0
    %v324 = vadd.f32 0.0, %v323
    %v325 = vpop.f32.mrb[0].mxu0
    %326 = vmatprep.mubr.f32.mxu0 0.0
    %327 = vmatmul.mubr.f32.gmra.mrb[0].mxu0 %v255
    %v328 = vpop.f32.mrb[0].mxu0
    %v329 = vadd.f32 0.0, %v328
    %v330 = vpop.f32.mrb[0].mxu0
    %331 = vdwg.mxu0
    %v333 = vsel %vm250, %v123, 0
    %v336 = vsel %vm250, %v128, 0
    %338 = vmatprep.subr.mxu0 0.0
    %339 = vmatpush1.msra.mxu0 %v131
    %340 = vmatprep.subr.mxu0 0.0
    %341 = vmatpush1.msra.mxu0 %v132
    %342 = vmatprep.subr.mxu0 0.0
    %343 = vmatpush1.msra.mxu0 %v133
    %344 = vmatprep.subr.mxu0 0.0
    %345 = vmatpush1.msra.mxu0 %v134
    %346 = vmatprep.subr.mxu0 0.0
    %347 = vmatpush1.msra.mxu0 %v135
    %348 = vmatprep.subr.mxu0 0.0
    %349 = vmatpush1.msra.mxu0 %v136
    %350 = vmatprep.subr.mxu0 0.0
    %351 = vmatpush1.msra.mxu0 %v137
    %352 = vmatprep.subr.mxu0 0.0
    %353 = vmatpush1.msra.mxu0 %v138
    %354 = vmatprep.subr.mxu0 0.0
    %355 = vmatpush1.msra.mxu0 0.0
    %356 = vmatprep.subr.mxu0 0.0
    %357 = vmatpush1.msra.mxu0 0.0
    %358 = vmatprep.subr.mxu0 0.0
    %359 = vmatpush1.msra.mxu0 0.0
    %360 = vmatprep.subr.mxu0 0.0
    %361 = vmatpush1.msra.mxu0 0.0
    %362 = vmatprep.subr.mxu0 0.0
    %363 = vmatpush1.msra.mxu0 0.0
    %364 = vmatprep.subr.mxu0 0.0
    %365 = vmatpush1.msra.mxu0 0.0
    %366 = vmatprep.subr.mxu0 0.0
    %367 = vmatpush1.msra.mxu0 0.0
    %368 = vmatprep.subr.mxu0 0.0
    %369 = vmatpush1.msra.mxu0 0.0
    %370 = vmatprep.subr.mxu0 0.0
    %371 = vmatpush1.msra.mxu0 0.0
    %372 = vmatprep.subr.mxu0 0.0
    %373 = vmatpush1.msra.mxu0 0.0
    %374 = vmatprep.subr.mxu0 0.0
    %375 = vmatpush1.msra.mxu0 0.0
    %376 = vmatprep.subr.mxu0 0.0
    %377 = vmatpush1.msra.mxu0 0.0
    %378 = vmatprep.subr.mxu0 0.0
    %379 = vmatpush1.msra.mxu0 0.0
    %380 = vmatprep.subr.mxu0 0.0
    %381 = vmatpush1.msra.mxu0 0.0
    %382 = vmatprep.subr.mxu0 0.0
    %383 = vmatpush1.msra.mxu0 0.0
    %384 = vmatprep.subr.mxu0 0.0
    %385 = vmatpush1.msra.mxu0 0.0
    %386 = vmatprep.subr.mxu0 0.0
    %387 = vmatpush1.msra.mxu0 0.0
    %388 = vmatprep.subr.mxu0 0.0
    %389 = vmatpush1.msra.mxu0 0.0
    %390 = vmatprep.subr.mxu0 0.0
    %391 = vmatpush1.msra.mxu0 0.0
    %392 = vmatprep.subr.mxu0 0.0
    %393 = vmatpush1.msra.mxu0 0.0
    %394 = vmatprep.subr.mxu0 0.0
    %395 = vmatpush1.msra.mxu0 0.0
    %396 = vmatprep.subr.mxu0 0.0
    %397 = vmatpush1.msra.mxu0 0.0
    %398 = vmatprep.subr.mxu0 0.0
    %399 = vmatpush1.msra.mxu0 0.0
    %400 = vmatprep.subr.mxu0 0.0
    %401 = vmatpush1.msra.mxu0 0.0
    %402 = vmatprep.mubr.f32.mxu0 0.0
    %403 = vmatmul.mubr.f32.gmra.mrb[0].mxu0 %v333
    %v404 = vpop.f32.mrb[0].mxu0
    %v405 = vadd.f32 %v324, %v404
    %v406 = vpop.f32.mrb[0].mxu0
    %407 = vmatprep.mubr.f32.mxu0 0.0
    %408 = vmatmul.mubr.f32.gmra.mrb[0].mxu0 %v336
    %v409 = vpop.f32.mrb[0].mxu0
    %v410 = vadd.f32 %v329, %v409
    %v411 = vpop.f32.mrb[0].mxu0
    %412 = vdwg.mxu0
    %v413 = vld [vmem:[%s3] sm:$0xff]
    %v414 = vld [vmem:[%s3 + $0x8] sm:$0xff]
    %v415 = vld [vmem:[%s3 + $0x10] sm:$0xff]
    %v416 = vld [vmem:[%s3 + $0x18] sm:$0xff]
    %v417 = vld [vmem:[%s3 + $0x20] sm:$0xff]
    %v418 = vld [vmem:[%s3 + $0x28] sm:$0xff]
    %v419 = vld [vmem:[%s3 + $0x30] sm:$0xff]
    %v420 = vld [vmem:[%s3 + $0x38] sm:$0xff]
    %v421 = vld [vmem:[%s3 + $0x40] sm:$0xff]
    %v422 = vld [vmem:[%s3 + $0x48] sm:$0xff]
    %v423 = vld [vmem:[%s3 + $0x50] sm:$0xff]
    %v424 = vld [vmem:[%s3 + $0x58] sm:$0xff]
    %v425 = vld [vmem:[%s3 + $0x60] sm:$0xff]
    %v426 = vld [vmem:[%s3 + $0x68] sm:$0xff]
    %v427 = vld [vmem:[%s3 + $0x70] sm:$0xff]
    %v428 = vld [vmem:[%s3 + $0x78] sm:$0xff]
    %429 = vset.pattern.permute.xlu0 2
    %430 = vperm.xlu0 %429, %v24
    %v431 = vpop.permute.xlu0 %430
    %432 = vset.pattern.permute.xlu0 2
    %433 = vperm.xlu0 %432, %v25
    %v434 = vpop.permute.xlu0 %433
    %vm435 = vcmp.eq.s32.totalorder %v431, %v43
    %vm436 = vcmp.eq.s32.totalorder %v434, %v43
    %v437 = vsel %vm435, 1, 0
    %v438 = vsel %vm436, 1, 0
    %v439 = vcvt.s32.f32 %v437
    %v440 = vcvt.s32.f32 %v438
    %441 = vmatprep.subr.mxu0 0.0
    %442 = vmatpush1.msra.mxu0 %v413
    %443 = vmatprep.subr.mxu0 0.0
    %444 = vmatpush1.msra.mxu0 %v414
    %445 = vmatprep.subr.mxu0 0.0
    %446 = vmatpush1.msra.mxu0 %v415
    %447 = vmatprep.subr.mxu0 0.0
    %448 = vmatpush1.msra.mxu0 %v416
    %449 = vmatprep.subr.mxu0 0.0
    %450 = vmatpush1.msra.mxu0 %v417
    %451 = vmatprep.subr.mxu0 0.0
    %452 = vmatpush1.msra.mxu0 %v418
    %453 = vmatprep.subr.mxu0 0.0
    %454 = vmatpush1.msra.mxu0 %v419
    %455 = vmatprep.subr.mxu0 0.0
    %456 = vmatpush1.msra.mxu0 %v420
    %457 = vmatprep.subr.mxu0 0.0
    %458 = vmatpush1.msra.mxu0 %v421
    %459 = vmatprep.subr.mxu0 0.0
    %460 = vmatpush1.msra.mxu0 %v422
    %461 = vmatprep.subr.mxu0 0.0
    %462 = vmatpush1.msra.mxu0 %v423
    %463 = vmatprep.subr.mxu0 0.0
    %464 = vmatpush1.msra.mxu0 %v424
    %465 = vmatprep.subr.mxu0 0.0
    %466 = vmatpush1.msra.mxu0 %v425
    %467 = vmatprep.subr.mxu0 0.0
    %468 = vmatpush1.msra.mxu0 %v426
    %469 = vmatprep.subr.mxu0 0.0
    %470 = vmatpush1.msra.mxu0 %v427
    %471 = vmatprep.subr.mxu0 0.0
    %472 = vmatpush1.msra.mxu0 %v428
    %473 = vmatprep.subr.mxu0 0.0
    %474 = vmatpush1.msra.mxu0 0.0
    %475 = vmatprep.subr.mxu0 0.0
    %476 = vmatpush1.msra.mxu0 0.0
    %477 = vmatprep.subr.mxu0 0.0
    %478 = vmatpush1.msra.mxu0 0.0
    %479 = vmatprep.subr.mxu0 0.0
    %480 = vmatpush1.msra.mxu0 0.0
    %481 = vmatprep.subr.mxu0 0.0
    %482 = vmatpush1.msra.mxu0 0.0
    %483 = vmatprep.subr.mxu0 0.0
    %484 = vmatpush1.msra.mxu0 0.0
    %485 = vmatprep.subr.mxu0 0.0
    %486 = vmatpush1.msra.mxu0 0.0
    %487 = vmatprep.subr.mxu0 0.0
    %488 = vmatpush1.msra.mxu0 0.0
    %489 = vmatprep.subr.mxu0 0.0
    %490 = vmatpush1.msra.mxu0 0.0
    %491 = vmatprep.subr.mxu0 0.0
    %492 = vmatpush1.msra.mxu0 0.0
    %493 = vmatprep.subr.mxu0 0.0
    %494 = vmatpush1.msra.mxu0 0.0
    %495 = vmatprep.subr.mxu0 0.0
    %496 = vmatpush1.msra.mxu0 0.0
    %497 = vmatprep.subr.mxu0 0.0
    %498 = vmatpush1.msra.mxu0 0.0
    %499 = vmatprep.subr.mxu0 0.0
    %500 = vmatpush1.msra.mxu0 0.0
    %501 = vmatprep.subr.mxu0 0.0
    %502 = vmatpush1.msra.mxu0 0.0
    %503 = vmatprep.subr.mxu0 0.0
    %504 = vmatpush1.msra.mxu0 0.0
    %505 = vmatprep.mubr.f32.mxu0 0.0
    %506 = vmatmul.mubr.f32.gmra.mrb[0].mxu0 %v439
    %v507 = vpop.f32.mrb[0].mxu0
    %v508 = vadd.f32 0.0, %v507
    %v509 = vpop.f32.mrb[0].mxu0
    %510 = vmatprep.mubr.f32.mxu0 0.0
    %511 = vmatmul.mubr.f32.gmra.mrb[0].mxu0 %v440
    %v512 = vpop.f32.mrb[0].mxu0
    %v513 = vadd.f32 0.0, %v512
    %v514 = vpop.f32.mrb[0].mxu0
    %515 = vdwg.mxu0
    %v516 = vld [vmem:[%s4 + $0x80] sm:$0xff]
    %v517 = vld [vmem:[%s4 + $0x88] sm:$0xff]
    %v518 = vld [vmem:[%s4 + $0x90] sm:$0xff]
    %v519 = vld [vmem:[%s4 + $0x98] sm:$0xff]
    %v520 = vld [vmem:[%s4 + $0xa0] sm:$0xff]
    %v521 = vld [vmem:[%s4 + $0xa8] sm:$0xff]
    %v522 = vld [vmem:[%s4 + $0xb0] sm:$0xff]
    %v523 = vld [vmem:[%s4 + $0xb8] sm:$0xff]
    %v525 = vsel %vm250, %v508, 0
    %v528 = vsel %vm250, %v513, 0
    %530 = vmatprep.subr.mxu0 0.0
    %531 = vmatpush1.msra.mxu0 %v516
    %532 = vmatprep.subr.mxu0 0.0
    %533 = vmatpush1.msra.mxu0 %v517
    %534 = vmatprep.subr.mxu0 0.0
    %535 = vmatpush1.msra.mxu0 %v518
    %536 = vmatprep.subr.mxu0 0.0
    %537 = vmatpush1.msra.mxu0 %v519
    %538 = vmatprep.subr.mxu0 0.0
    %539 = vmatpush1.msra.mxu0 %v520
    %540 = vmatprep.subr.mxu0 0.0
    %541 = vmatpush1.msra.mxu0 %v521
    %542 = vmatprep.subr.mxu0 0.0
    %543 = vmatpush1.msra.mxu0 %v522
    %544 = vmatprep.subr.mxu0 0.0
    %545 = vmatpush1.msra.mxu0 %v523
    %546 = vmatprep.subr.mxu0 0.0
    %547 = vmatpush1.msra.mxu0 0.0
    %548 = vmatprep.subr.mxu0 0.0
    %549 = vmatpush1.msra.mxu0 0.0
    %550 = vmatprep.subr.mxu0 0.0
    %551 = vmatpush1.msra.mxu0 0.0
    %552 = vmatprep.subr.mxu0 0.0
    %553 = vmatpush1.msra.mxu0 0.0
    %554 = vmatprep.subr.mxu0 0.0
    %555 = vmatpush1.msra.mxu0 0.0
    %556 = vmatprep.subr.mxu0 0.0
    %557 = vmatpush1.msra.mxu0 0.0
    %558 = vmatprep.subr.mxu0 0.0
    %559 = vmatpush1.msra.mxu0 0.0
    %560 = vmatprep.subr.mxu0 0.0
    %561 = vmatpush1.msra.mxu0 0.0
    %562 = vmatprep.subr.mxu0 0.0
    %563 = vmatpush1.msra.mxu0 0.0
    %564 = vmatprep.subr.mxu0 0.0
    %565 = vmatpush1.msra.mxu0 0.0
    %566 = vmatprep.subr.mxu0 0.0
    %567 = vmatpush1.msra.mxu0 0.0
    %568 = vmatprep.subr.mxu0 0.0
    %569 = vmatpush1.msra.mxu0 0.0
    %570 = vmatprep.subr.mxu0 0.0
    %571 = vmatpush1.msra.mxu0 0.0
    %572 = vmatprep.subr.mxu0 0.0
    %573 = vmatpush1.msra.mxu0 0.0
    %574 = vmatprep.subr.mxu0 0.0
    %575 = vmatpush1.msra.mxu0 0.0
    %576 = vmatprep.subr.mxu0 0.0
    %577 = vmatpush1.msra.mxu0 0.0
    %578 = vmatprep.subr.mxu0 0.0
    %579 = vmatpush1.msra.mxu0 0.0
    %580 = vmatprep.subr.mxu0 0.0
    %581 = vmatpush1.msra.mxu0 0.0
    %582 = vmatprep.subr.mxu0 0.0
    %583 = vmatpush1.msra.mxu0 0.0
    %584 = vmatprep.subr.mxu0 0.0
    %585 = vmatpush1.msra.mxu0 0.0
    %586 = vmatprep.subr.mxu0 0.0
    %587 = vmatpush1.msra.mxu0 0.0
    %588 = vmatprep.subr.mxu0 0.0
    %589 = vmatpush1.msra.mxu0 0.0
    %590 = vmatprep.subr.mxu0 0.0
    %591 = vmatpush1.msra.mxu0 0.0
    %592 = vmatprep.subr.mxu0 0.0
    %593 = vmatpush1.msra.mxu0 0.0
    %594 = vmatprep.mubr.f32.mxu0 0.0
    %595 = vmatmul.mubr.f32.gmra.mrb[0].mxu0 %v525
    %v596 = vpop.f32.mrb[0].mxu0
    %v597 = vadd.f32 0.0, %v596
    %v598 = vpop.f32.mrb[0].mxu0
    %599 = vmatprep.mubr.f32.mxu0 0.0
    %600 = vmatmul.mubr.f32.gmra.mrb[0].mxu0 %v528
    %v601 = vpop.f32.mrb[0].mxu0
    %v602 = vadd.f32 0.0, %v601
    %v603 = vpop.f32.mrb[0].mxu0
    %604 = vdwg.mxu0
    %v605 = vadd.f32 %v405, %v597
    %v606 = vadd.f32 %v410, %v602
    %v607 = vld [vmem:[%s5] sm:$0x1]
    %v609 = vlaneseq
    %v610 = vshrl.u32 %v609, 7
    %v611 = vsub.s32 0, %v610
    %v612 = vrot.slane %v607, %v611
    %v614 = vadd.f32 %v605, %v612
    %v615 = vadd.f32 %v606, %v612
    %v616 = vmax.f32 %v614, 0.0
    %v617 = vmax.f32 %v615, 0.0
    %618 = vst.msk [vmem:[#allocation2] sm:$0xff] %vm250, %v616
    %619 = vst.msk [vmem:[#allocation2 + $0x8] sm:$0xff] %vm250, %v617
    // Predicated region
    $region26: #{tpu_custom_call.1} parent=1 // pred_check
      _
    $region27: #{tpu_custom_call.1} parent=1 // pred_check_branch
      %621 = sbr.rel (0) target = $region29
    $region28: #{tpu_custom_call.1} parent=1 // pred_region
      %s623 = ssub.s32 256, 256
      %624 = vsyncadd [#allocation3], %s623
      %s625 = sshll.u32 [#allocation2], 4
      %s626 = int_to_ptr.vmem [resolvable:$true] %s625
      %631 = dma.vmem_to_hbm [thread:$0]  %s626, 256, %s6, [#allocation3], 128, 128, 8
    $region29: #{tpu_custom_call.1} parent=1 // pred_fallthru
      _
    // Predicated region
    $region30: #{tpu_custom_call.1} parent=1 // pred_check
      _
    $region31: #{tpu_custom_call.1} parent=1 // pred_check_branch
      %633 = sbr.rel (0) target = $region33
    $region32: #{tpu_custom_call.1} parent=1 // pred_region
      %634 = dma.done [#allocation3], 256
    $region33: #{tpu_custom_call.1} parent=1 // pred_fallthru
      _
    %635 = vsyncpa [#allocation3], 1

</llo_original>
